<compile_context>
chip_gen: v5e
topology: v5e:2x2
jax: 0.10.0
libtpu: 0.0.40
codegen_flags: <defaults>
</compile_context>

<pallas_src>
import jax
import jax.numpy as jnp
from jax.experimental import pallas as pl
from jax.experimental.pallas import tpu as pltpu


def _round_up(n, m):
    return ((n + m - 1) // m) * m


def scaling_net_kernel(xt_ref, w1_ref, b1_ref, w2_ref, b2_ref, w3_ref, b3_ref,
                       ot_ref):
    # Everything is (features, TM): batch lives on the lane axis.
    xt = xt_ref[...]                                                 # bf16 (in_total, TM)

    # fc1 + ReLU   (bf16 MXU, f32 accumulate, f32 elementwise)
    h1 = jnp.dot(w1_ref[...], xt, preferred_element_type=jnp.float32)       # (width, TM) f32
    h1 = jnp.maximum(h1 + b1_ref[...], 0.0)

    # fc2 + ReLU
    h2 = jnp.dot(w2_ref[...], h1.astype(jnp.bfloat16),
                 preferred_element_type=jnp.float32)                        # (width, TM) f32
    h2 = jnp.maximum(h2 + b2_ref[...], 0.0)

    # fc3 + exp(tanh(.))
    h3 = jnp.dot(w3_ref[...], h2.astype(jnp.bfloat16),
                 preferred_element_type=jnp.float32)                        # (out, TM) f32
    h3 = h3 + b3_ref[...]
    ot_ref[...] = jnp.exp(jnp.tanh(h3)).astype(ot_ref.dtype)


def scaling_net_forward(x, params, *, tm=16384, transposed_output=False):
    """x: [batch, in_features + condition_size] float32.

    params are in PyTorch nn.Linear layout: w [out, in], b [out].
    Returns [batch, out_features] float32 (or [out_features, batch] if
    transposed_output=True, saving one HBM pass for layout-agnostic callers).
    """
    w1, b1, w2, b2, w3, b3 = params
    batch, in_total = x.shape
    width = w1.shape[0]
    out_features = w3.shape[0]

    # Degenerate tiny-batch case: pad up to one full 128-lane tile (cheap).
    if batch < 128:
        x = jnp.pad(x, ((0, 128 - batch), (0, 0)))
        batch_p = 128
    else:
        batch_p = batch

    # Lane-dense batch tile: multiple of 128, capped at half the batch so the
    # grid has >=2 steps (both v7x TensorCores engaged via "parallel").
    tm_eff = min(tm, _round_up(pl.cdiv(batch_p, 2), 128))
    num_tiles = pl.cdiv(batch_p, tm_eff)   # edge block handles the ragged tail

    # Transposed + bf16 at the pallas_call boundary.  XLA fuses the transpose
    # and the convert into a single HBM pass (layout plumbing only).
    xt = x.T.astype(jnp.bfloat16)                                  # (in_total, batch_p)
    w1b = w1.astype(jnp.bfloat16)                                  # (width, in_total)
    w2b = w2.astype(jnp.bfloat16)                                  # (width, width)
    w3b = w3.astype(jnp.bfloat16)                                  # (out,   width)
    b1c = b1.reshape(width, 1).astype(jnp.float32)
    b2c = b2.reshape(width, 1).astype(jnp.float32)
    b3c = b3.reshape(out_features, 1).astype(jnp.float32)

    # Weights/biases: full-array blocks, same block index every step -> they
    # stay resident in VMEM while x/out tiles stream through.
    resident = lambda a: pl.BlockSpec(a.shape, lambda i: (0, 0))

    out_t = pl.pallas_call(
        scaling_net_kernel,
        out_shape=jax.ShapeDtypeStruct((out_features, batch_p), jnp.float32),
        grid=(num_tiles,),
        in_specs=[
            # TODO(synk): if xprof shows exposed input DMA at large tm, add
            # pipeline_mode=pl.Buffered(3) on this spec.
            pl.BlockSpec((in_total, tm_eff), lambda i: (0, i)),
            resident(w1b), resident(b1c),
            resident(w2b), resident(b2c),
            resident(w3b), resident(b3c),
        ],
        out_specs=pl.BlockSpec((out_features, tm_eff), lambda i: (0, i)),
        compiler_params=pltpu.CompilerParams(
            dimension_semantics=("parallel",),
            vmem_limit_bytes=48 * 1024 * 1024),
    )(xt, w1b, b1c, w2b, b2c, w3b, b3c)

    if transposed_output:
        return out_t[:, :batch]
    return out_t.T[:batch]


def init_params(key, in_features, out_features, width, condition_size):
    """Deterministic synthetic init; PyTorch layout (w: [out, in], b: [out])."""
    in_total = in_features + condition_size
    k1, k2, k3, k4, k5, k6 = jax.random.split(key, 6)
    w1 = jax.random.normal(k1, (width, in_total), jnp.float32) * 0.1
    b1 = jax.random.normal(k2, (width,), jnp.float32) * 0.1
    w2 = jax.random.normal(k3, (width, width), jnp.float32) * 0.1
    b2 = jax.random.normal(k4, (width,), jnp.float32) * 0.1
    w3 = jax.random.normal(k5, (out_features, width), jnp.float32) * 0.1
    b3 = jax.random.normal(k6, (out_features,), jnp.float32) * 0.1
    return (w1, b1, w2, b2, w3, b3)


def reference_forward_f32(x, params):
    """Full-precision reference (matches the PyTorch module exactly)."""
    w1, b1, w2, b2, w3, b3 = params
    h1 = jnp.maximum(x @ w1.T + b1, 0.0)
    h2 = jnp.maximum(h1 @ w2.T + b2, 0.0)
    return jnp.exp(jnp.tanh(h2 @ w3.T + b3))


def reference_forward_bf16(x, params):
    """Reference with the same bf16-input / f32-accumulate matmuls as the kernel."""
    w1, b1, w2, b2, w3, b3 = params
    bf = jnp.bfloat16
    h1 = jnp.dot(x.astype(bf), w1.T.astype(bf),
                 preferred_element_type=jnp.float32) + b1
    h1 = jnp.maximum(h1, 0.0)
    h2 = jnp.dot(h1.astype(bf), w2.T.astype(bf),
                 preferred_element_type=jnp.float32) + b2
    h2 = jnp.maximum(h2, 0.0)
    h3 = jnp.dot(h2.astype(bf), w3.T.astype(bf),
                 preferred_element_type=jnp.float32) + b3
    return jnp.exp(jnp.tanh(h3))


if __name__ == "__main__":
    in_features = 6
    condition_size = 2
    out_features = 4
    width = 32

    key = jax.random.PRNGKey(0)
    kx, kp = jax.random.split(key)
    params = init_params(kp, in_features, out_features, width, condition_size)

    # Case 1: batch=300 -> >=2-tile rule gives tm_eff=256, a 2-step grid and a
    # ragged edge block (exercises the no-pad tail handling).
    batch = 300
    x = jax.random.normal(kx, (batch, in_features + condition_size), jnp.float32)
    out = scaling_net_forward(x, params)
    out = jax.block_until_ready(out)
    assert out.shape == (batch, out_features)

    ref_bf16 = reference_forward_bf16(x, params)
    assert jnp.allclose(out, ref_bf16, atol=2e-3, rtol=2e-3), \
        "mismatch vs bf16-matched reference"
    ref_f32 = reference_forward_f32(x, params)
    assert jnp.allclose(out, ref_f32, atol=5e-2, rtol=5e-2), \
        "mismatch vs f32 reference"

    # Case 2: tiny batch (<128) exercises the single-tile padded path.
    batch_small = 77
    x_s = jax.random.normal(jax.random.PRNGKey(1),
                            (batch_small, in_features + condition_size),
                            jnp.float32)
    out_s = jax.block_until_ready(scaling_net_forward(x_s, params))
    assert out_s.shape == (batch_small, out_features)
    assert jnp.allclose(out_s, reference_forward_bf16(x_s, params),
                        atol=2e-3, rtol=2e-3), "small-batch mismatch"

    print("KERNEL_OK")
</pallas_src>

<mosaic_0001>
module attributes {stable_mosaic.version = 11 : i64} {
  func.func @scaling_net_kernel(%arg0: i32, %arg1: memref<8x256xbf16, #tpu.memory_space<vmem>>, %arg2: memref<32x8xbf16, #tpu.memory_space<vmem>>, %arg3: memref<32x1xf32, #tpu.memory_space<vmem>>, %arg4: memref<32x32xbf16, #tpu.memory_space<vmem>>, %arg5: memref<32x1xf32, #tpu.memory_space<vmem>>, %arg6: memref<4x32xbf16, #tpu.memory_space<vmem>>, %arg7: memref<4x1xf32, #tpu.memory_space<vmem>>, %arg8: memref<4x256xf32, #tpu.memory_space<vmem>>) attributes {dimension_semantics = [#tpu.dimension_semantics<parallel>], iteration_bounds = array<i64: 2>, scalar_prefetch = 0 : i64, scratch_operands = 0 : i64, tpu.core_type = #tpu.core_type<tc>, window_params = [{transform_indices = @transform_0, window_bounds = array<i64: 8, 256>}, {pipeline_mode = #tpu.pipeline_mode<synchronous>, transform_indices = @transform_1, window_bounds = array<i64: 32, 8>}, {pipeline_mode = #tpu.pipeline_mode<synchronous>, transform_indices = @transform_2, window_bounds = array<i64: 32, 1>}, {pipeline_mode = #tpu.pipeline_mode<synchronous>, transform_indices = @transform_3, window_bounds = array<i64: 32, 32>}, {pipeline_mode = #tpu.pipeline_mode<synchronous>, transform_indices = @transform_4, window_bounds = array<i64: 32, 1>}, {pipeline_mode = #tpu.pipeline_mode<synchronous>, transform_indices = @transform_5, window_bounds = array<i64: 4, 32>}, {pipeline_mode = #tpu.pipeline_mode<synchronous>, transform_indices = @transform_6, window_bounds = array<i64: 4, 1>}, {transform_indices = @transform_7, window_bounds = array<i64: 4, 256>}]} {
    %c0 = arith.constant 0 : index
    %c0_0 = arith.constant 0 : index
    %0 = vector.load %arg1[%c0, %c0_0] : memref<8x256xbf16, #tpu.memory_space<vmem>>, vector<8x256xbf16>
    %c0_1 = arith.constant 0 : index
    %c0_2 = arith.constant 0 : index
    %1 = vector.load %arg2[%c0_1, %c0_2] : memref<32x8xbf16, #tpu.memory_space<vmem>>, vector<32x8xbf16>
    %cst = arith.constant dense<0.000000e+00> : vector<32x256xf32>
    %2 = tpu.matmul %1, %0, %cst {dimension_numbers = #tpu.dot_dimension_numbers<[1], [0], [0], [1], [0, 0, 1, 1], [], []>} : vector<32x8xbf16>, vector<8x256xbf16>, vector<32x256xf32> -> vector<32x256xf32>
    %c0_3 = arith.constant 0 : index
    %c0_4 = arith.constant 0 : index
    %3 = vector.load %arg3[%c0_3, %c0_4] : memref<32x1xf32, #tpu.memory_space<vmem>>, vector<32x1xf32>
    %4 = vector.broadcast %3 : vector<32x1xf32> to vector<32x256xf32>
    %5 = arith.addf %2, %4 : vector<32x256xf32>
    %cst_5 = arith.constant 0.000000e+00 : f32
    %6 = vector.broadcast %cst_5 : f32 to vector<32x256xf32>
    %7 = arith.maximumf %5, %6 : vector<32x256xf32>
    %c0_6 = arith.constant 0 : index
    %c0_7 = arith.constant 0 : index
    %8 = vector.load %arg4[%c0_6, %c0_7] : memref<32x32xbf16, #tpu.memory_space<vmem>>, vector<32x32xbf16>
    %9 = arith.truncf %7 : vector<32x256xf32> to vector<32x256xbf16>
    %cst_8 = arith.constant dense<0.000000e+00> : vector<32x256xf32>
    %10 = tpu.matmul %8, %9, %cst_8 {dimension_numbers = #tpu.dot_dimension_numbers<[1], [0], [0], [1], [0, 0, 1, 1], [], []>} : vector<32x32xbf16>, vector<32x256xbf16>, vector<32x256xf32> -> vector<32x256xf32>
    %c0_9 = arith.constant 0 : index
    %c0_10 = arith.constant 0 : index
    %11 = vector.load %arg5[%c0_9, %c0_10] : memref<32x1xf32, #tpu.memory_space<vmem>>, vector<32x1xf32>
    %12 = vector.broadcast %11 : vector<32x1xf32> to vector<32x256xf32>
    %13 = arith.addf %10, %12 : vector<32x256xf32>
    %cst_11 = arith.constant 0.000000e+00 : f32
    %14 = vector.broadcast %cst_11 : f32 to vector<32x256xf32>
    %15 = arith.maximumf %13, %14 : vector<32x256xf32>
    %c0_12 = arith.constant 0 : index
    %c0_13 = arith.constant 0 : index
    %16 = vector.load %arg6[%c0_12, %c0_13] : memref<4x32xbf16, #tpu.memory_space<vmem>>, vector<4x32xbf16>
    %17 = arith.truncf %15 : vector<32x256xf32> to vector<32x256xbf16>
    %cst_14 = arith.constant dense<0.000000e+00> : vector<4x256xf32>
    %18 = tpu.matmul %16, %17, %cst_14 {dimension_numbers = #tpu.dot_dimension_numbers<[1], [0], [0], [1], [0, 0, 1, 1], [], []>} : vector<4x32xbf16>, vector<32x256xbf16>, vector<4x256xf32> -> vector<4x256xf32>
    %c0_15 = arith.constant 0 : index
    %c0_16 = arith.constant 0 : index
    %19 = vector.load %arg7[%c0_15, %c0_16] : memref<4x1xf32, #tpu.memory_space<vmem>>, vector<4x1xf32>
    %20 = vector.broadcast %19 : vector<4x1xf32> to vector<4x256xf32>
    %21 = arith.addf %18, %20 : vector<4x256xf32>
    %22 = math.tanh %21 : vector<4x256xf32>
    %23 = math.exp %22 : vector<4x256xf32>
    %c0_17 = arith.constant 0 : index
    %c0_18 = arith.constant 0 : index
    %24 = vector.load %arg8[%c0_17, %c0_18] : memref<4x256xf32, #tpu.memory_space<vmem>>, vector<4x256xf32>
    tpu.vector_store %arg8[%c0_17, %c0_18], %23 {strides = array<i32>} : memref<4x256xf32, #tpu.memory_space<vmem>>, vector<4x256xf32>,
    return
  }
  func.func @transform_0(%arg0: i32) -> (i32, i32) {
    %c0_i32 = arith.constant 0 : i32
    %c0_i32_0 = arith.constant 0 : i32
    return %c0_i32, %arg0 : i32, i32
  }
  func.func @transform_1(%arg0: i32) -> (i32, i32) {
    %c0_i32 = arith.constant 0 : i32
    %c0_i32_0 = arith.constant 0 : i32
    %c0_i32_1 = arith.constant 0 : i32
    return %c0_i32, %c0_i32_0 : i32, i32
  }
  func.func @transform_2(%arg0: i32) -> (i32, i32) {
    %c0_i32 = arith.constant 0 : i32
    %c0_i32_0 = arith.constant 0 : i32
    %c0_i32_1 = arith.constant 0 : i32
    return %c0_i32, %c0_i32_0 : i32, i32
  }
  func.func @transform_3(%arg0: i32) -> (i32, i32) {
    %c0_i32 = arith.constant 0 : i32
    %c0_i32_0 = arith.constant 0 : i32
    %c0_i32_1 = arith.constant 0 : i32
    return %c0_i32, %c0_i32_0 : i32, i32
  }
  func.func @transform_4(%arg0: i32) -> (i32, i32) {
    %c0_i32 = arith.constant 0 : i32
    %c0_i32_0 = arith.constant 0 : i32
    %c0_i32_1 = arith.constant 0 : i32
    return %c0_i32, %c0_i32_0 : i32, i32
  }
  func.func @transform_5(%arg0: i32) -> (i32, i32) {
    %c0_i32 = arith.constant 0 : i32
    %c0_i32_0 = arith.constant 0 : i32
    %c0_i32_1 = arith.constant 0 : i32
    return %c0_i32, %c0_i32_0 : i32, i32
  }
  func.func @transform_6(%arg0: i32) -> (i32, i32) {
    %c0_i32 = arith.constant 0 : i32
    %c0_i32_0 = arith.constant 0 : i32
    %c0_i32_1 = arith.constant 0 : i32
    return %c0_i32, %c0_i32_0 : i32, i32
  }
  func.func @transform_7(%arg0: i32) -> (i32, i32) {
    %c0_i32 = arith.constant 0 : i32
    %c0_i32_0 = arith.constant 0 : i32
    return %c0_i32, %arg0 : i32, i32
  }
}

</mosaic_0001>

<llo_original>
// kernel: tpu_custom_call.1
$region0: #{tpu_custom_call.1}
  #allocation0 [shape = 'u32[]', space=smem, size = 0x4, offset = 0x4, fixed_abs, tag = 'smem constant byte address 0x4 - core index']
  #allocation1 [shape = 'u32[72,128]{1,0:T(1,128)}', space=vmem, size = 0x9000, scoped, tag = 'internal scratch']
  %s0 = inlined_call_operand.vmem [shape: bf16[8,300], index: 0, kind: input, shape index: {}]
  %s1 = inlined_call_operand.vmem [shape: bf16[32,8], index: 1, kind: input, shape index: {}]
  %s2 = inlined_call_operand.vmem [shape: f32[32,1], index: 2, kind: input, shape index: {}]
  %s3 = inlined_call_operand.vmem [shape: bf16[32,32], index: 3, kind: input, shape index: {}]
  %s4 = inlined_call_operand.vmem [shape: f32[32,1], index: 4, kind: input, shape index: {}]
  %s5 = inlined_call_operand.vmem [shape: bf16[4,32], index: 5, kind: input, shape index: {}]
  %s6 = inlined_call_operand.vmem [shape: f32[4,1], index: 6, kind: input, shape index: {}]
  %s7 = inlined_call_operand.hbm [shape: f32[4,300], index: 7, kind: output, shape index: {}]
  %s8 = sld [smem:[#allocation0]]
  $region61: #{tpu_custom_call.1} parent=0
    _
  %s10 = ssub.s32 1, %s8
  %s11 = scalar_select 0, %s10, %s8
  $region1: #{tpu_custom_call.1} parent=0
    #allocation2 [shape = 'u8[8192]{0}', space=vmem, size = 0x2000, scoped, tag = 'output window, operand 0']
    #allocation3 [shape = 's32[2]{0}', space=sflag, size = 0x8, scoped, tag = 'scoped memory for tpu_custom_call.1']
    %12 = vsyncpa [#allocation3], 0
    %s13 = scalar_lea.sflag [#allocation3], 1
    %14 = vsyncpa %s13, 0
    loop: start=0, step=1, limit=4
    $region2: #{tpu_custom_call.1} parent=1 // loop_pre_header
      _
    $region3: #{tpu_custom_call.1} parent=1 // loop_header
      %s16 = sphi 0, %s20
      %p17 = scmp.ge.s32.totalorder %s16, 4
      %s26 = sphi 0, %s28
      %s29 = sphi 0, %s26
      %s30 = sphi 0, %s29
      %s46 = sphi 0, %s30
      %s50 = sphi 0, %s50
      %s52 = sphi 0, %s50
      %s53 = sphi 0, %s52
      %s67 = sphi 0, %s53
      %s71 = sphi 0, %s71
      %s73 = sphi 0, %s71
      %s74 = sphi 0, %s73
      %s88 = sphi 0, %s74
      %s92 = sphi 0, %s92
      %s94 = sphi 0, %s92
      %s95 = sphi 0, %s94
      %s109 = sphi 0, %s95
      %s113 = sphi 0, %s113
      %s115 = sphi 0, %s113
      %s116 = sphi 0, %s115
      %s130 = sphi 0, %s116
      %s134 = sphi 0, %s134
      %s136 = sphi 0, %s134
      %s137 = sphi 0, %s136
      %s151 = sphi 0, %s137
      %s155 = sphi 0, %s155
      %s157 = sphi 0, %s155
      %s158 = sphi 0, %s157
      %s172 = sphi 0, %s158
      %s178 = sphi 0, %s180
      %s181 = sphi 0, %s178
      %s182 = sphi 0, %s181
      %s198 = sphi 0, %s182
    $region4: #{tpu_custom_call.1} parent=1 // loop_header_branch
      %19 = sbr.rel (%p17) target = $region8
    $region5: #{tpu_custom_call.1} parent=1 // loop_body
      %s21 = ssub.s32 %s16, 1
      %s22 = ssub.s32 %s16, 2
      %s23 = sadd.s32 %s16, 1
      %s24 = ssub.s32 %s16, %s23
      %p25 = scmp.eq.s32.totalorder %s24, 0
      %s27 = sadd.s32 %s26, 1
      %s28 = scalar_select %p25, %s26, %s27
      %p31 = pneg %p25
      %p32 = scmp.eq.s32.totalorder %s16, 1
      %p33 = por %p31, %p32
      %p34 = scmp.ne.s32.totalorder %s26, %s29
      %p35 = scmp.eq.s32.totalorder %s16, 0
      %p36 = por %p34, %p35
      %p37 = scmp.ne.s32.totalorder %s26, %s29
      %p38 = scmp.eq.s32.totalorder %s21, 1
      %p39 = por %p37, %p38
      %p40 = scmp.ne.s32.totalorder %s29, %s30
      %p41 = scmp.eq.s32.totalorder %s21, 0
      %p42 = por %p40, %p41
      %p43 = scmp.ne.s32.totalorder %s29, %s30
      %p44 = scmp.eq.s32.totalorder %s22, 1
      %p45 = por %p43, %p44
      %p47 = scmp.ne.s32.totalorder %s30, %s46
      %p48 = scmp.eq.s32.totalorder %s22, 0
      %p49 = por %p47, %p48
      %s51 = sadd.s32 %s50, 1
      %p54 = scmp.eq.s32.totalorder %s16, 1
      %p55 = scmp.ne.s32.totalorder %s50, %s52
      %p56 = scmp.eq.s32.totalorder %s16, 0
      %p57 = por %p55, %p56
      %p58 = scmp.ne.s32.totalorder %s50, %s52
      %p59 = scmp.eq.s32.totalorder %s21, 1
      %p60 = por %p58, %p59
      %p61 = scmp.ne.s32.totalorder %s52, %s53
      %p62 = scmp.eq.s32.totalorder %s21, 0
      %p63 = por %p61, %p62
      %p64 = scmp.ne.s32.totalorder %s52, %s53
      %p65 = scmp.eq.s32.totalorder %s22, 1
      %p66 = por %p64, %p65
      %p68 = scmp.ne.s32.totalorder %s53, %s67
      %p69 = scmp.eq.s32.totalorder %s22, 0
      %p70 = por %p68, %p69
      %s72 = sadd.s32 %s71, 1
      %p75 = scmp.eq.s32.totalorder %s16, 1
      %p76 = scmp.ne.s32.totalorder %s71, %s73
      %p77 = scmp.eq.s32.totalorder %s16, 0
      %p78 = por %p76, %p77
      %p79 = scmp.ne.s32.totalorder %s71, %s73
      %p80 = scmp.eq.s32.totalorder %s21, 1
      %p81 = por %p79, %p80
      %p82 = scmp.ne.s32.totalorder %s73, %s74
      %p83 = scmp.eq.s32.totalorder %s21, 0
      %p84 = por %p82, %p83
      %p85 = scmp.ne.s32.totalorder %s73, %s74
      %p86 = scmp.eq.s32.totalorder %s22, 1
      %p87 = por %p85, %p86
      %p89 = scmp.ne.s32.totalorder %s74, %s88
      %p90 = scmp.eq.s32.totalorder %s22, 0
      %p91 = por %p89, %p90
      %s93 = sadd.s32 %s92, 1
      %p96 = scmp.eq.s32.totalorder %s16, 1
      %p97 = scmp.ne.s32.totalorder %s92, %s94
      %p98 = scmp.eq.s32.totalorder %s16, 0
      %p99 = por %p97, %p98
      %p100 = scmp.ne.s32.totalorder %s92, %s94
      %p101 = scmp.eq.s32.totalorder %s21, 1
      %p102 = por %p100, %p101
      %p103 = scmp.ne.s32.totalorder %s94, %s95
      %p104 = scmp.eq.s32.totalorder %s21, 0
      %p105 = por %p103, %p104
      %p106 = scmp.ne.s32.totalorder %s94, %s95
      %p107 = scmp.eq.s32.totalorder %s22, 1
      %p108 = por %p106, %p107
      %p110 = scmp.ne.s32.totalorder %s95, %s109
      %p111 = scmp.eq.s32.totalorder %s22, 0
      %p112 = por %p110, %p111
      %s114 = sadd.s32 %s113, 1
      %p117 = scmp.eq.s32.totalorder %s16, 1
      %p118 = scmp.ne.s32.totalorder %s113, %s115
      %p119 = scmp.eq.s32.totalorder %s16, 0
      %p120 = por %p118, %p119
      %p121 = scmp.ne.s32.totalorder %s113, %s115
      %p122 = scmp.eq.s32.totalorder %s21, 1
      %p123 = por %p121, %p122
      %p124 = scmp.ne.s32.totalorder %s115, %s116
      %p125 = scmp.eq.s32.totalorder %s21, 0
      %p126 = por %p124, %p125
      %p127 = scmp.ne.s32.totalorder %s115, %s116
      %p128 = scmp.eq.s32.totalorder %s22, 1
      %p129 = por %p127, %p128
      %p131 = scmp.ne.s32.totalorder %s116, %s130
      %p132 = scmp.eq.s32.totalorder %s22, 0
      %p133 = por %p131, %p132
      %s135 = sadd.s32 %s134, 1
      %p138 = scmp.eq.s32.totalorder %s16, 1
      %p139 = scmp.ne.s32.totalorder %s134, %s136
      %p140 = scmp.eq.s32.totalorder %s16, 0
      %p141 = por %p139, %p140
      %p142 = scmp.ne.s32.totalorder %s134, %s136
      %p143 = scmp.eq.s32.totalorder %s21, 1
      %p144 = por %p142, %p143
      %p145 = scmp.ne.s32.totalorder %s136, %s137
      %p146 = scmp.eq.s32.totalorder %s21, 0
      %p147 = por %p145, %p146
      %p148 = scmp.ne.s32.totalorder %s136, %s137
      %p149 = scmp.eq.s32.totalorder %s22, 1
      %p150 = por %p148, %p149
      %p152 = scmp.ne.s32.totalorder %s137, %s151
      %p153 = scmp.eq.s32.totalorder %s22, 0
      %p154 = por %p152, %p153
      %s156 = sadd.s32 %s155, 1
      %p159 = scmp.eq.s32.totalorder %s16, 1
      %p160 = scmp.ne.s32.totalorder %s155, %s157
      %p161 = scmp.eq.s32.totalorder %s16, 0
      %p162 = por %p160, %p161
      %p163 = scmp.ne.s32.totalorder %s155, %s157
      %p164 = scmp.eq.s32.totalorder %s21, 1
      %p165 = por %p163, %p164
      %p166 = scmp.ne.s32.totalorder %s157, %s158
      %p167 = scmp.eq.s32.totalorder %s21, 0
      %p168 = por %p166, %p167
      %p169 = scmp.ne.s32.totalorder %s157, %s158
      %p170 = scmp.eq.s32.totalorder %s22, 1
      %p171 = por %p169, %p170
      %p173 = scmp.ne.s32.totalorder %s158, %s172
      %p174 = scmp.eq.s32.totalorder %s22, 0
      %p175 = por %p173, %p174
      %s176 = ssub.s32 %s16, %s23
      %p177 = scmp.eq.s32.totalorder %s176, 0
      %s179 = sadd.s32 %s178, 1
      %s180 = scalar_select %p177, %s178, %s179
      %p183 = pneg %p177
      %p184 = scmp.eq.s32.totalorder %s16, 1
      %p185 = por %p183, %p184
      %p186 = scmp.ne.s32.totalorder %s178, %s181
      %p187 = scmp.eq.s32.totalorder %s16, 0
      %p188 = por %p186, %p187
      %p189 = scmp.ne.s32.totalorder %s178, %s181
      %p190 = scmp.eq.s32.totalorder %s21, 1
      %p191 = por %p189, %p190
      %p192 = scmp.ne.s32.totalorder %s181, %s182
      %p193 = scmp.eq.s32.totalorder %s21, 0
      %p194 = por %p192, %p193
      %p195 = scmp.ne.s32.totalorder %s181, %s182
      %p196 = scmp.eq.s32.totalorder %s22, 1
      %p197 = por %p195, %p196
      %p199 = scmp.ne.s32.totalorder %s182, %s198
      %p200 = scmp.eq.s32.totalorder %s22, 0
      %p201 = por %p199, %p200
      %p202 = scmp.le.s32.totalorder 1, %s16
      %p203 = scmp.lt.s32.totalorder %s16, 3
      %p204 = pnand %p202, %p203
      %p205 = pneg %p204
      // Predicated region
      $region9: #{tpu_custom_call.1} parent=5 // pred_check
        _
      $region10: #{tpu_custom_call.1} parent=5 // pred_check_branch
        %207 = sbr.rel (%p204) target = $region12
      $region11: #{tpu_custom_call.1} parent=5 // pred_region
        %s208 = ssub.s32 %s16, 1
        // Predicated region
        $region13: #{tpu_custom_call.1} parent=11 // pred_check
          %p209 = pneg %p63
        $region14: #{tpu_custom_call.1} parent=11 // pred_check_branch
          %211 = sbr.rel (%p209) target = $region16
        $region15: #{tpu_custom_call.1} parent=11 // pred_region
          _
        $region16: #{tpu_custom_call.1} parent=11 // pred_fallthru
          _
        // Predicated region
        $region17: #{tpu_custom_call.1} parent=11 // pred_check
          %p212 = pneg %p84
        $region18: #{tpu_custom_call.1} parent=11 // pred_check_branch
          %214 = sbr.rel (%p212) target = $region20
        $region19: #{tpu_custom_call.1} parent=11 // pred_region
          _
        $region20: #{tpu_custom_call.1} parent=11 // pred_fallthru
          _
        // Predicated region
        $region21: #{tpu_custom_call.1} parent=11 // pred_check
          %p215 = pneg %p105
        $region22: #{tpu_custom_call.1} parent=11 // pred_check_branch
          %217 = sbr.rel (%p215) target = $region24
        $region23: #{tpu_custom_call.1} parent=11 // pred_region
          _
        $region24: #{tpu_custom_call.1} parent=11 // pred_fallthru
          _
        // Predicated region
        $region25: #{tpu_custom_call.1} parent=11 // pred_check
          %p218 = pneg %p126
        $region26: #{tpu_custom_call.1} parent=11 // pred_check_branch
          %220 = sbr.rel (%p218) target = $region28
        $region27: #{tpu_custom_call.1} parent=11 // pred_region
          _
        $region28: #{tpu_custom_call.1} parent=11 // pred_fallthru
          _
        // Predicated region
        $region29: #{tpu_custom_call.1} parent=11 // pred_check
          %p221 = pneg %p147
        $region30: #{tpu_custom_call.1} parent=11 // pred_check_branch
          %223 = sbr.rel (%p221) target = $region32
        $region31: #{tpu_custom_call.1} parent=11 // pred_region
          _
        $region32: #{tpu_custom_call.1} parent=11 // pred_fallthru
          _
        // Predicated region
        $region33: #{tpu_custom_call.1} parent=11 // pred_check
          %p224 = pneg %p168
        $region34: #{tpu_custom_call.1} parent=11 // pred_check_branch
          %226 = sbr.rel (%p224) target = $region36
        $region35: #{tpu_custom_call.1} parent=11 // pred_region
          _
        $region36: #{tpu_custom_call.1} parent=11 // pred_fallthru
          _
      $region12: #{tpu_custom_call.1} parent=5 // pred_fallthru
        _
      %p227 = scmp.lt.s32.totalorder %s16, 2
      // Predicated region
      $region37: #{tpu_custom_call.1} parent=5 // pred_check
        %p228 = pneg %p227
      $region38: #{tpu_custom_call.1} parent=5 // pred_check_branch
        %230 = sbr.rel (%p228) target = $region40
      $region39: #{tpu_custom_call.1} parent=5 // pred_region
        // Predicated region
        $region41: #{tpu_custom_call.1} parent=39 // pred_check
          %p231 = pneg %p36
        $region42: #{tpu_custom_call.1} parent=39 // pred_check_branch
          %233 = sbr.rel (%p231) target = $region44
        $region43: #{tpu_custom_call.1} parent=39 // pred_region
          %s234 = smul.u32 2, %s16
          %s235 = ssub.s32 3, %s234
          %p236 = scmp.lt.s32.totalorder %s235, 2
          %s237 = scalar_select %p236, %s235, 2
          %s238 = smul.u32 4, %s237
          %p239 = scmp.lt.s32.totalorder %s234, 2
          %s240 = scalar_select %p239, %s234, 2
          %s241 = smul.addr %s240, 4
          %s242 = scalar_lea.vmem %s0, %s241
          %s243 = smul.u32 2, %s16
          %s244 = ssub.s32 3, %s243
          %p245 = scmp.lt.s32.totalorder %s244, 2
          %s246 = scalar_select %p245, %s244, 2
          %s247 = smul.u32 4, %s246
        $region44: #{tpu_custom_call.1} parent=39 // pred_fallthru
          _
      $region40: #{tpu_custom_call.1} parent=5 // pred_fallthru
        _
      %p248 = scmp.le.s32.totalorder 1, %s16
      %p249 = scmp.lt.s32.totalorder %s16, 3
      %p250 = pnand %p248, %p249
      %p251 = pneg %p250
      // Predicated region
      $region45: #{tpu_custom_call.1} parent=5 // pred_check
        _
      $region46: #{tpu_custom_call.1} parent=5 // pred_check_branch
        %253 = sbr.rel (%p250) target = $region48
      $region47: #{tpu_custom_call.1} parent=5 // pred_region
        %s254 = ssub.s32 %s16, 1
        %s255 = smul.u32 2, %s21
        %s256 = ssub.s32 3, %s255
        %p257 = scmp.lt.s32.totalorder %s256, 2
        %s258 = scalar_select %p257, %s256, 2
        %s259 = smul.u32 4, %s258
        %p260 = scmp.lt.s32.totalorder %s255, 2
        %s261 = scalar_select %p260, %s255, 2
        %s262 = smul.addr %s261, 4
        %s263 = scalar_lea.vmem %s0, %s262
        %p264 = pneg %p42
        %p265 = pneg %p39
        %p266 = pneg %p63
        %p267 = pneg %p60
        %p268 = pneg %p84
        %p269 = pneg %p81
        %p270 = pneg %p105
        %p271 = pneg %p102
        %p272 = pneg %p126
        %p273 = pneg %p123
        %p274 = pneg %p147
        %p275 = pneg %p144
        %p276 = pneg %p168
        %p277 = pneg %p165
        %p278 = pneg %p194
        %p279 = pneg %p191
        %s280 = sand.u32 %s181, 1
        %s281 = scalar_lea.sflag [#allocation3], %s280
        %s282 = sand.u32 %s181, 1
        %s283 = smul.addr %s282, 8
        %s284 = scalar_lea.vmem [#allocation2], %s283
        %s285 = smul.u32 2, %s21
        %s286 = ssub.s32 3, %s285
        %p287 = scmp.lt.s32.totalorder %s286, 2
        %s288 = scalar_select %p287, %s286, 2
        %s289 = smul.u32 4, %s288
        %p290 = scmp.lt.s32.totalorder %s285, 2
        %s291 = scalar_select %p290, %s285, 2
        %s292 = smul.addr %s291, 4
        %s293 = scalar_lea.vmem %s0, %s292
        %s294 = smul.u32 2, %s21
        %s295 = ssub.s32 3, %s294
        %p296 = scmp.lt.s32.totalorder %s295, 2
        %s297 = scalar_select %p296, %s295, 2
        %s298 = smul.u32 4, %s297
        %s299 = smul.u32 2, %s21
        %s300 = ssub.s32 3, %s299
        %p301 = scmp.lt.s32.totalorder %s300, 2
        %s302 = scalar_select %p301, %s300, 2
        %s303 = smul.u32 4, %s302
        %v305 = vld [vmem:[%s293] sm:$0xff]
        %v306 = vld [vmem:[%s1] sm:$0xf]
        %v307 = vld [vmem:[%s1 + $0x4] sm:$0xf]
        %v308 = vld [vmem:[%s1 + $0x8] sm:$0xf]
        %v309 = vld [vmem:[%s1 + $0xc] sm:$0xf]
        %v310 = vld [vmem:[%s2] sm:$0xff]
        %v311 = vld [vmem:[%s2 + $0x8] sm:$0xff]
        %v312 = vld [vmem:[%s2 + $0x10] sm:$0xff]
        %v313 = vld [vmem:[%s2 + $0x18] sm:$0xff]
        %315 = vset.pattern.permute.xlu0 0
        %316 = vperm.xlu0 %315, %v310
        %v317 = vpop.permute.xlu0 %316
        %320 = vset.pattern.permute.xlu0 0
        %321 = vperm.xlu0 %320, %v311
        %v322 = vpop.permute.xlu0 %321
        %325 = vset.pattern.permute.xlu0 0
        %326 = vperm.xlu0 %325, %v312
        %v327 = vpop.permute.xlu0 %326
        %330 = vset.pattern.permute.xlu0 0
        %331 = vperm.xlu0 %330, %v313
        %v332 = vpop.permute.xlu0 %331
        %v338 = vunpack.c.l.b16 %v306
        %v339 = vunpack.c.l.b16 %v307
        %v340 = vunpack.c.l.b16 %v308
        %v341 = vunpack.c.l.b16 %v309
        %v342 = vpack.c.b16 %v339, %v338
        %v343 = vpack.c.b16 %v341, %v340
        %v345 = vunpack.c.l.b16 %v305
        %v346 = vunpack.c.h.b16 %v305
        %v347 = vpack.c.b16 %v345, %v345
        %v348 = vpack.c.b16 %v346, %v346
        %vm349 = vcmask 64512
        %v351 = vsel %vm349, %v342, 0
        %v354 = vsel %vm349, %v343, 0
        %vm356 = vcmask 1043456
        %v358 = vsel %vm356, %v347, 0
        %v361 = vsel %vm356, %v348, 0
        %363 = vmatpush.bf16.msra.mxu0 0
        %364 = vmatpush.bf16.msra.mxu0 0
        %365 = vmatpush.bf16.msra.mxu0 0
        %366 = vmatpush.bf16.msra.mxu0 0
        %367 = vmatpush.bf16.msra.mxu0 0
        %368 = vmatpush.bf16.msra.mxu0 0
        %369 = vmatpush.bf16.msra.mxu0 0
        %370 = vmatpush.bf16.msra.mxu0 %v358
        %371 = vmatmul.bf16.gmra.mxu0 %v351
        %v372 = vpop.f32.mrf.mxu0
        %v373 = vadd.f32 %v317, %v372
        %v374 = vpop.f32.mrf.mxu0
        %v375 = vadd.f32 %v322, %v374
        %376 = vmatmul.bf16.gmra.mxu0 %v354
        %v377 = vpop.f32.mrf.mxu0
        %v378 = vadd.f32 %v327, %v377
        %v379 = vpop.f32.mrf.mxu0
        %v380 = vadd.f32 %v332, %v379
        %381 = vdwg.mxu0
        %382 = vmatpush.bf16.msra.mxu0 0
        %383 = vmatpush.bf16.msra.mxu0 0
        %384 = vmatpush.bf16.msra.mxu0 0
        %385 = vmatpush.bf16.msra.mxu0 0
        %386 = vmatpush.bf16.msra.mxu0 0
        %387 = vmatpush.bf16.msra.mxu0 0
        %388 = vmatpush.bf16.msra.mxu0 0
        %389 = vmatpush.bf16.msra.mxu0 %v361
        %390 = vmatmul.bf16.gmra.mxu0 %v351
        %v391 = vpop.f32.mrf.mxu0
        %v392 = vadd.f32 %v317, %v391
        %v393 = vpop.f32.mrf.mxu0
        %v394 = vadd.f32 %v322, %v393
        %395 = vmatmul.bf16.gmra.mxu0 %v354
        %v396 = vpop.f32.mrf.mxu0
        %v397 = vadd.f32 %v327, %v396
        %v398 = vpop.f32.mrf.mxu0
        %v399 = vadd.f32 %v332, %v398
        %400 = vdwg.mxu0
        %v401 = vmax.f32 %v373, 0.0
        %v402 = vmax.f32 %v392, 0.0
        %v403 = vmax.f32 %v375, 0.0
        %v404 = vmax.f32 %v394, 0.0
        %v405 = vmax.f32 %v378, 0.0
        %v406 = vmax.f32 %v397, 0.0
        %v407 = vmax.f32 %v380, 0.0
        %v408 = vmax.f32 %v399, 0.0
        %v409 = vld [vmem:[%s3] sm:$0xf]
        %v410 = vld [vmem:[%s3 + $0x4] sm:$0xf]
        %v411 = vld [vmem:[%s3 + $0x8] sm:$0xf]
        %v412 = vld [vmem:[%s3 + $0xc] sm:$0xf]
        %v413 = vpack.c.bf16 %v403, %v401
        %v414 = vpack.c.bf16 %v404, %v402
        %v415 = vpack.c.bf16 %v407, %v405
        %v416 = vpack.c.bf16 %v408, %v406
        %v417 = vld [vmem:[%s4] sm:$0xff]
        %v418 = vld [vmem:[%s4 + $0x8] sm:$0xff]
        %v419 = vld [vmem:[%s4 + $0x10] sm:$0xff]
        %v420 = vld [vmem:[%s4 + $0x18] sm:$0xff]
        %422 = vset.pattern.permute.xlu0 0
        %423 = vperm.xlu0 %422, %v417
        %v424 = vpop.permute.xlu0 %423
        %427 = vset.pattern.permute.xlu0 0
        %428 = vperm.xlu0 %427, %v418
        %v429 = vpop.permute.xlu0 %428
        %432 = vset.pattern.permute.xlu0 0
        %433 = vperm.xlu0 %432, %v419
        %v434 = vpop.permute.xlu0 %433
        %437 = vset.pattern.permute.xlu0 0
        %438 = vperm.xlu0 %437, %v420
        %v439 = vpop.permute.xlu0 %438
        %v445 = vunpack.c.l.b16 %v409
        %v446 = vunpack.c.l.b16 %v410
        %v447 = vunpack.c.l.b16 %v411
        %v448 = vunpack.c.l.b16 %v412
        %v449 = vpack.c.b16 %v446, %v445
        %v450 = vpack.c.b16 %v448, %v447
        %vm451 = vcmask 261120
        %v453 = vsel %vm451, %v449, 0
        %v456 = vsel %vm451, %v450, 0
        %458 = vmatpush.bf16.msra.mxu0 0
        %459 = vmatpush.bf16.msra.mxu0 0
        %460 = vmatpush.bf16.msra.mxu0 0
        %461 = vmatpush.bf16.msra.mxu0 0
        %462 = vmatpush.bf16.msra.mxu0 0
        %463 = vmatpush.bf16.msra.mxu0 0
        %464 = vmatpush.bf16.msra.mxu0 %v415
        %465 = vmatpush.bf16.msra.mxu0 %v413
        %466 = vmatmul.bf16.gmra.mxu0 %v453
        %v467 = vpop.f32.mrf.mxu0
        %v468 = vadd.f32 %v424, %v467
        %v469 = vpop.f32.mrf.mxu0
        %v470 = vadd.f32 %v429, %v469
        %471 = vmatmul.bf16.gmra.mxu0 %v456
        %v472 = vpop.f32.mrf.mxu0
        %v473 = vadd.f32 %v434, %v472
        %v474 = vpop.f32.mrf.mxu0
        %v475 = vadd.f32 %v439, %v474
        %476 = vdwg.mxu0
        %477 = vmatpush.bf16.msra.mxu0 0
        %478 = vmatpush.bf16.msra.mxu0 0
        %479 = vmatpush.bf16.msra.mxu0 0
        %480 = vmatpush.bf16.msra.mxu0 0
        %481 = vmatpush.bf16.msra.mxu0 0
        %482 = vmatpush.bf16.msra.mxu0 0
        %483 = vmatpush.bf16.msra.mxu0 %v416
        %484 = vmatpush.bf16.msra.mxu0 %v414
        %485 = vmatmul.bf16.gmra.mxu0 %v453
        %v486 = vpop.f32.mrf.mxu0
        %v487 = vadd.f32 %v424, %v486
        %v488 = vpop.f32.mrf.mxu0
        %v489 = vadd.f32 %v429, %v488
        %490 = vmatmul.bf16.gmra.mxu0 %v456
        %v491 = vpop.f32.mrf.mxu0
        %v492 = vadd.f32 %v434, %v491
        %v493 = vpop.f32.mrf.mxu0
        %v494 = vadd.f32 %v439, %v493
        %495 = vdwg.mxu0
        %v496 = vmax.f32 %v468, 0.0
        %v497 = vmax.f32 %v487, 0.0
        %v498 = vmax.f32 %v470, 0.0
        %v499 = vmax.f32 %v489, 0.0
        %v500 = vmax.f32 %v473, 0.0
        %v501 = vmax.f32 %v492, 0.0
        %v502 = vmax.f32 %v475, 0.0
        %v503 = vmax.f32 %v494, 0.0
        %v504 = vld [vmem:[%s5] sm:$0x3]
        %v505 = vpack.c.bf16 %v498, %v496
        %v506 = vpack.c.bf16 %v499, %v497
        %v507 = vpack.c.bf16 %v502, %v500
        %v508 = vpack.c.bf16 %v503, %v501
        %v509 = vld [vmem:[%s6] sm:$0xf]
        %511 = vset.pattern.permute.xlu0 0
        %512 = vperm.xlu0 %511, %v509
        %v513 = vpop.permute.xlu0 %512
        %v516 = vsel %vm451, %v504, 0
        %518 = vmatpush.bf16.msra.mxu0 0
        %519 = vmatpush.bf16.msra.mxu0 0
        %520 = vmatpush.bf16.msra.mxu0 0
        %521 = vmatpush.bf16.msra.mxu0 0
        %522 = vmatpush.bf16.msra.mxu0 0
        %523 = vmatpush.bf16.msra.mxu0 0
        %524 = vmatpush.bf16.msra.mxu0 %v507
        %525 = vmatpush.bf16.msra.mxu0 %v505
        %526 = vmatmul.bf16.gmra.mxu0 %v516
        %v527 = vpop.f32.mrf.mxu0
        %v528 = vadd.f32 %v513, %v527
        %v529 = vpop.f32.mrf.mxu0
        %530 = vdwg.mxu0
        %531 = vmatpush.bf16.msra.mxu0 0
        %532 = vmatpush.bf16.msra.mxu0 0
        %533 = vmatpush.bf16.msra.mxu0 0
        %534 = vmatpush.bf16.msra.mxu0 0
        %535 = vmatpush.bf16.msra.mxu0 0
        %536 = vmatpush.bf16.msra.mxu0 0
        %537 = vmatpush.bf16.msra.mxu0 %v508
        %538 = vmatpush.bf16.msra.mxu0 %v506
        %539 = vmatmul.bf16.gmra.mxu0 %v516
        %v540 = vpop.f32.mrf.mxu0
        %v541 = vadd.f32 %v513, %v540
        %v542 = vpop.f32.mrf.mxu0
        %543 = vdwg.mxu0
        %v544 = vtanh.pop %v528
        %v545 = vtanh.pop %v541
        %v546 = vmul.f32 %v544, 1.442695
        %v547 = vpow.pop %v546
        %v548 = vmul.f32 %v545, 1.442695
        %v549 = vpow.pop %v548
        %v552 = vrot.slane %v549, 4
        %v553 = vsel %vm356, %v547, %v552
        %555 = vst [vmem:[%s284] sm:$0xff] %v553
        %s556 = sand.u32 %s181, 1
        %s557 = scalar_lea.sflag [#allocation3], %s556
        %s558 = sand.u32 %s181, 1
        %s559 = smul.addr %s558, 8
        %s560 = scalar_lea.vmem [#allocation2], %s559
        // Predicated region
        $region49: #{tpu_custom_call.1} parent=47 // pred_check
          %p561 = pneg %p191
        $region50: #{tpu_custom_call.1} parent=47 // pred_check_branch
          %563 = sbr.rel (%p561) target = $region52
        $region51: #{tpu_custom_call.1} parent=47 // pred_region
          %s564 = smul.u32 2, %s21
          %s565 = ssub.s32 3, %s564
          %p566 = scmp.lt.s32.totalorder %s565, 2
          %s567 = scalar_select %p566, %s565, 2
          %s568 = smul.u32 4, %s567
          %s569 = ssub.s32 8, %s568
          %s570 = sshll.u32 %s569, 4
          %571 = vsyncadd %s557, %s570
          %p572 = scmp.ne.s32.totalorder 0, %s568
          %s573 = smul.addr %s564, 4
          %s574 = scalar_lea.hbm %s7, %s573
          %s575 = smul.u32 %s567, 4
          %s576 = sshll.u32 %s575, 4
          %s577 = sshll.u32 %s560, 4
          %s578 = int_to_ptr.vmem [resolvable:$true] %s577
          %s579 = sshll.u32 %s574, 4
          %s580 = int_to_ptr.hbm [resolvable:$true] %s579
          %582 = dma.vmem_to_hbm [thread:$0]  (%p572), %s578, %s576, %s580, %s557
        $region52: #{tpu_custom_call.1} parent=47 // pred_fallthru
          _
      $region48: #{tpu_custom_call.1} parent=5 // pred_fallthru
        _
      %p583 = scmp.le.s32.totalorder 2, %s16
      // Predicated region
      $region53: #{tpu_custom_call.1} parent=5 // pred_check
        %p584 = pneg %p583
      $region54: #{tpu_custom_call.1} parent=5 // pred_check_branch
        %586 = sbr.rel (%p584) target = $region56
      $region55: #{tpu_custom_call.1} parent=5 // pred_region
        %s587 = ssub.s32 %s16, 2
        // Predicated region
        $region57: #{tpu_custom_call.1} parent=55 // pred_check
          %p588 = pneg %p197
        $region58: #{tpu_custom_call.1} parent=55 // pred_check_branch
          %590 = sbr.rel (%p588) target = $region60
        $region59: #{tpu_custom_call.1} parent=55 // pred_region
          %s591 = sand.u32 %s182, 1
          %s592 = scalar_lea.sflag [#allocation3], %s591
          %s593 = sand.u32 %s182, 1
          %s594 = smul.addr %s593, 8
          %s595 = scalar_lea.vmem [#allocation2], %s594
          %597 = dma.done %s592, 128
        $region60: #{tpu_custom_call.1} parent=55 // pred_fallthru
          _
      $region56: #{tpu_custom_call.1} parent=5 // pred_fallthru
        _
    $region6: #{tpu_custom_call.1} parent=1 // loop_footer
      %s20 = sadd.s32 1, %s16
    $region7: #{tpu_custom_call.1} parent=1 // loop_footer_branch
      %15 = sbr.rel target = $region3
    $region8: #{tpu_custom_call.1} parent=1 // loop_exit
      _
    %598 = vsyncpa [#allocation3], 1
    %s599 = scalar_lea.sflag [#allocation3], 1
    %600 = vsyncpa %s599, 1

</llo_original>
